<compile_context>
chip_gen: v5e
topology: v5e:2x2
jax: 0.10.0
libtpu: 0.0.40
codegen_flags: <defaults>
</compile_context>

<pallas_src>
import functools

import jax
import jax.numpy as jnp
from jax.experimental import pallas as pl
from jax.experimental.pallas import tpu as pltpu

_LANE = 128
_SUBLANE = 8


def _round_up(x, m):
    return (x + m - 1) // m * m


def _pad2d(x, rows, cols):
    return jnp.pad(x, ((0, rows - x.shape[0]), (0, cols - x.shape[1])))


# ----------------------------------------------------------------------------
# Fused Pallas kernel: the whole MLP stack in one invocation per batch tile.
# ----------------------------------------------------------------------------
def _fused_mlp_kernel(num_layers, compute_dtype, seg_offsets, seg_widths, *refs):
    """refs = (x, W0, b0, ..., W_{L-1}, b_{L-1}, [Wq, bq], out_slab)

    Weights are pre-transposed to (in, out), zero-padded to lane-dense
    128-multiples on the OUT dim (and on the K dim for every layer except the
    first), and pre-cast to bf16.  The running activation never leaves
    VMEM/vregs; all outputs land in one lane-dense f32 slab via static,
    128-aligned slice stores.
    """
    has_vq = num_layers > 1
    n_in = 1 + 2 * num_layers + (2 if has_vq else 0)
    in_refs = refs[:n_in]
    out_ref = refs[n_in]

    if has_vq:
        wq = in_refs[n_in - 2][...]          # (Hp, Vp)  bf16 (pre-cast)
        bq = in_refs[n_in - 1][...]          # (1, Vp)   f32

    # Cast the input activation to the MXU dtype once.
    hc = in_refs[0][...].astype(compute_dtype)   # (block_m, Din)

    si = 0
    for l in range(num_layers):
        w = in_refs[1 + 2 * l][...]          # (inP, outP) bf16 (pre-cast)
        b = in_refs[2 + 2 * l][...]          # (1, outP)   f32
        h_lin = jnp.dot(hc, w, preferred_element_type=jnp.float32) + b   # f32
        if l != num_layers - 1:
            # pre-activation output (static, 128-aligned slice -> unmasked vst)
            out_ref[:, seg_offsets[si]:seg_offsets[si] + seg_widths[si]] = h_lin
            # ReLU (+ identity dropout) in f32, then ONE cast reused by both dots.
            hc = jnp.maximum(h_lin, 0.0).astype(compute_dtype)
            vq = jnp.dot(hc, wq, preferred_element_type=jnp.float32) + bq
            out_ref[:, seg_offsets[si + 1]:seg_offsets[si + 1] + seg_widths[si + 1]] = vq
            si += 2
        else:
            out_ref[:, seg_offsets[si]:seg_offsets[si] + seg_widths[si]] = h_lin


# ----------------------------------------------------------------------------
# One-time parameter preparation: transpose + zero-pad + cast to bf16.
# ----------------------------------------------------------------------------
def prepare_params(layer_params, lin_params, num_layers,
                   compute_dtype=jnp.bfloat16):
    """PyTorch layout (out,in)/(out,) -> (inP,outP) bf16 / (1,outP) f32, once.

    Layer 0 keeps its true input dim as the K extent (the input tensor is not
    padded in the feature dim); deeper layers pad K to 128 with zero rows so
    the padded activation lanes contribute nothing.
    """
    padded_layers = []
    for l, (w, b) in enumerate(layer_params):
        out_d, in_d = w.shape
        in_p = in_d if l == 0 else _round_up(in_d, _LANE)
        out_p = _round_up(out_d, _LANE)
        wp = _pad2d(w.T, in_p, out_p).astype(compute_dtype)
        bp = _pad2d(b[None, :], 1, out_p)                     # f32
        padded_layers.append((wp, bp))
    if num_layers > 1:
        w_lin, b_lin = lin_params
        out_d, in_d = w_lin.shape
        wqp = _pad2d(w_lin.T, _round_up(in_d, _LANE),
                     _round_up(out_d, _LANE)).astype(compute_dtype)
        bqp = _pad2d(b_lin[None, :], 1, _round_up(out_d, _LANE))   # f32
        padded_lin = (wqp, bqp)
    else:
        padded_lin = None                                     # never DMA'd
    return tuple(padded_layers), padded_lin


# ----------------------------------------------------------------------------
# Forward pass: a single fused pallas_call, batch-tiled grid.
# ----------------------------------------------------------------------------
@functools.partial(jax.jit, static_argnames=("num_layers", "dims", "block_m"))
def mlp_forward(feats, padded_layers, padded_lin, *, num_layers, dims,
                block_m=128):
    input_dim, hidden_dim, output_dim = dims
    B, Din = feats.shape

    # Only the batch dim is padded, and only when needed (no-op here).
    Bp = _round_up(max(B, _SUBLANE), block_m)
    xp = feats if Bp == B else jnp.pad(feats, ((0, Bp - B), (0, 0)))

    flat_w = []
    for wp, bp in padded_layers:
        flat_w += [wp, bp]
    if num_layers > 1:
        flat_w += [padded_lin[0], padded_lin[1]]   # only when actually used

    # Fused lane-dense output slab: one 128-aligned segment per logical output.
    seg_widths = []
    for l in range(num_layers - 1):
        seg_widths.append(padded_layers[l][0].shape[1])   # pre-activation h_l
        seg_widths.append(padded_lin[0].shape[1])         # vq_l
    seg_widths.append(padded_layers[-1][0].shape[1])      # final h
    seg_offsets, off = [], 0
    for w in seg_widths:
        seg_offsets.append(off)
        off += w
    total_w = off                                          # multiple of 128

    grid = (Bp // block_m,)

    def resident(arr):          # full array, same block for every grid step
        return pl.BlockSpec(arr.shape, lambda i: (0, 0))

    in_specs = [pl.BlockSpec((block_m, Din), lambda i: (i, 0))]
    in_specs += [resident(a) for a in flat_w]

    out_shape = jax.ShapeDtypeStruct((Bp, total_w), jnp.float32)
    out_spec = pl.BlockSpec((block_m, total_w), lambda i: (i, 0))

    compute_dtype = padded_layers[0][0].dtype
    kernel = functools.partial(_fused_mlp_kernel, num_layers, compute_dtype,
                               tuple(seg_offsets), tuple(seg_widths))

    out = pl.pallas_call(
        kernel,
        out_shape=out_shape,
        grid_spec=pltpu.PrefetchScalarGridSpec(
            num_scalar_prefetch=0,
            grid=grid,
            in_specs=in_specs,
            out_specs=out_spec,
        ),
        compiler_params=pltpu.CompilerParams(
            dimension_semantics=("parallel",),
            vmem_limit_bytes=32 * 1024 * 1024,
        ),
    )(xp, *flat_w)

    # Slice the fused slab back to true widths (outside the kernel).
    h_list = []
    si = 0
    for l in range(num_layers - 1):
        h_list.append(out[:B, seg_offsets[si]:seg_offsets[si] + hidden_dim])
        h_list.append(out[:B, seg_offsets[si + 1]:seg_offsets[si + 1] + input_dim])
        si += 2
    h = out[:B, seg_offsets[-1]:seg_offsets[-1] + output_dim]
    return h_list, h


# ----------------------------------------------------------------------------
# Parameter init (deterministic, mimics PyTorch nn.Linear default init)
# ----------------------------------------------------------------------------
def _init_linear(key, in_dim, out_dim):
    kw, kb = jax.random.split(key)
    bound = 1.0 / jnp.sqrt(jnp.float32(in_dim))
    # stored like PyTorch: W is (out, in); bias (out,)
    w = jax.random.uniform(kw, (out_dim, in_dim), jnp.float32, -bound, bound)
    b = jax.random.uniform(kb, (out_dim,), jnp.float32, -bound, bound)
    return w, b


def init_mlp_params(key, num_layers, input_dim, hidden_dim, output_dim):
    keys = jax.random.split(key, num_layers + 1)
    layers = []
    if num_layers == 1:
        layers.append(_init_linear(keys[0], input_dim, output_dim))
    else:
        layers.append(_init_linear(keys[0], input_dim, hidden_dim))
        for i in range(num_layers - 2):
            layers.append(_init_linear(keys[1 + i], hidden_dim, hidden_dim))
        layers.append(_init_linear(keys[num_layers - 1], hidden_dim, output_dim))
    # self.linear: hidden_dim -> input_dim
    lin = _init_linear(keys[num_layers], hidden_dim, input_dim)
    return layers, lin


# ----------------------------------------------------------------------------
# Pure-JAX f32 reference (module semantics) for a sanity check
# ----------------------------------------------------------------------------
def mlp_reference(feats, layer_params, lin_params, num_layers):
    w_lin, b_lin = lin_params
    h = feats
    h_list = []
    for l, (w, b) in enumerate(layer_params):
        h = h @ w.T + b
        if l != num_layers - 1:
            h_list.append(h)
            h = jnp.maximum(h, 0.0)
            vq = h @ w_lin.T + b_lin
            h_list.append(vq)
    return h_list, h


if __name__ == "__main__":
    batch = 256            # 2 tiles of 128 -> pipelined and megacore-shardable
    num_layers = 3
    input_dim = 32
    hidden_dim = 64
    output_dim = 16
    block_m = 128
    compute_dtype = jnp.bfloat16   # MXU inputs bf16; accumulation/bias/ReLU f32

    key = jax.random.PRNGKey(0)
    k_feats, k_params = jax.random.split(key)

    feats = jax.random.normal(k_feats, (batch, input_dim), jnp.float32)
    layer_params, lin_params = init_mlp_params(
        k_params, num_layers, input_dim, hidden_dim, output_dim
    )

    # One-time prep: transpose to (in, out), zero-pad lane-dense, cast to bf16.
    padded_layers, padded_lin = prepare_params(
        layer_params, lin_params, num_layers, compute_dtype=compute_dtype
    )

    h_list, h = mlp_forward(
        feats, padded_layers, padded_lin,
        num_layers=num_layers,
        dims=(input_dim, hidden_dim, output_dim),
        block_m=block_m,
    )
    jax.block_until_ready(h)
    for t in h_list:
        jax.block_until_ready(t)

    # Correctness check against pure-JAX f32 reference (bf16 matmul inputs need
    # a relaxed tolerance).
    ref_h_list, ref_h = mlp_reference(feats, layer_params, lin_params, num_layers)
    tol = 5e-2 if compute_dtype == jnp.bfloat16 else 1e-4

    assert len(h_list) == len(ref_h_list) == 2 * (num_layers - 1)
    for a, b in zip(h_list, ref_h_list):
        assert a.shape == b.shape
        assert jnp.allclose(a, b, atol=tol, rtol=tol), float(jnp.max(jnp.abs(a - b)))
    assert h.shape == (batch, output_dim)
    assert jnp.allclose(h, ref_h, atol=tol, rtol=tol), float(jnp.max(jnp.abs(h - ref_h)))

    print("KERNEL_OK")
</pallas_src>

<mosaic_0001>
module attributes {stable_mosaic.version = 11 : i64} {
  func.func @_fused_mlp_kernel(%arg0: i32, %arg1: memref<128x32xf32, #tpu.memory_space<vmem>>, %arg2: memref<32x128xbf16, #tpu.memory_space<vmem>>, %arg3: memref<1x128xf32, #tpu.memory_space<vmem>>, %arg4: memref<128x128xbf16, #tpu.memory_space<vmem>>, %arg5: memref<1x128xf32, #tpu.memory_space<vmem>>, %arg6: memref<128x128xbf16, #tpu.memory_space<vmem>>, %arg7: memref<1x128xf32, #tpu.memory_space<vmem>>, %arg8: memref<128x128xbf16, #tpu.memory_space<vmem>>, %arg9: memref<1x128xf32, #tpu.memory_space<vmem>>, %arg10: memref<128x640xf32, #tpu.memory_space<vmem>>) attributes {dimension_semantics = [#tpu.dimension_semantics<parallel>], iteration_bounds = array<i64: 2>, scalar_prefetch = 0 : i64, scratch_operands = 0 : i64, tpu.core_type = #tpu.core_type<tc>, window_params = [{transform_indices = @transform_0, window_bounds = array<i64: 128, 32>}, {pipeline_mode = #tpu.pipeline_mode<synchronous>, transform_indices = @transform_1, window_bounds = array<i64: 32, 128>}, {pipeline_mode = #tpu.pipeline_mode<synchronous>, transform_indices = @transform_2, window_bounds = array<i64: 1, 128>}, {pipeline_mode = #tpu.pipeline_mode<synchronous>, transform_indices = @transform_3, window_bounds = array<i64: 128, 128>}, {pipeline_mode = #tpu.pipeline_mode<synchronous>, transform_indices = @transform_4, window_bounds = array<i64: 1, 128>}, {pipeline_mode = #tpu.pipeline_mode<synchronous>, transform_indices = @transform_5, window_bounds = array<i64: 128, 128>}, {pipeline_mode = #tpu.pipeline_mode<synchronous>, transform_indices = @transform_6, window_bounds = array<i64: 1, 128>}, {pipeline_mode = #tpu.pipeline_mode<synchronous>, transform_indices = @transform_7, window_bounds = array<i64: 128, 128>}, {pipeline_mode = #tpu.pipeline_mode<synchronous>, transform_indices = @transform_8, window_bounds = array<i64: 1, 128>}, {transform_indices = @transform_9, window_bounds = array<i64: 128, 640>}]} {
    %c0 = arith.constant 0 : index
    %c0_0 = arith.constant 0 : index
    %0 = vector.load %arg8[%c0, %c0_0] : memref<128x128xbf16, #tpu.memory_space<vmem>>, vector<128x128xbf16>
    %c0_1 = arith.constant 0 : index
    %c0_2 = arith.constant 0 : index
    %1 = vector.load %arg9[%c0_1, %c0_2] : memref<1x128xf32, #tpu.memory_space<vmem>>, vector<1x128xf32>
    %c0_3 = arith.constant 0 : index
    %c0_4 = arith.constant 0 : index
    %2 = vector.load %arg1[%c0_3, %c0_4] : memref<128x32xf32, #tpu.memory_space<vmem>>, vector<128x32xf32>
    %3 = arith.truncf %2 : vector<128x32xf32> to vector<128x32xbf16>
    %c0_5 = arith.constant 0 : index
    %c0_6 = arith.constant 0 : index
    %4 = vector.load %arg2[%c0_5, %c0_6] : memref<32x128xbf16, #tpu.memory_space<vmem>>, vector<32x128xbf16>
    %c0_7 = arith.constant 0 : index
    %c0_8 = arith.constant 0 : index
    %5 = vector.load %arg3[%c0_7, %c0_8] : memref<1x128xf32, #tpu.memory_space<vmem>>, vector<1x128xf32>
    %cst = arith.constant dense<0.000000e+00> : vector<128x128xf32>
    %6 = tpu.matmul %3, %4, %cst {dimension_numbers = #tpu.dot_dimension_numbers<[1], [0], [0], [1], [0, 0, 1, 1], [], []>} : vector<128x32xbf16>, vector<32x128xbf16>, vector<128x128xf32> -> vector<128x128xf32>
    %7 = vector.broadcast %5 : vector<1x128xf32> to vector<128x128xf32>
    %8 = arith.addf %6, %7 : vector<128x128xf32>
    %c0_9 = arith.constant 0 : index
    %c0_10 = arith.constant 0 : index
    %9 = vector.load %arg10[%c0_9, %c0_10] : memref<128x640xf32, #tpu.memory_space<vmem>>, vector<128x128xf32>
    tpu.vector_store %arg10[%c0_9, %c0_10], %8 {strides = array<i32>} : memref<128x640xf32, #tpu.memory_space<vmem>>, vector<128x128xf32>,
    %cst_11 = arith.constant 0.000000e+00 : f32
    %10 = vector.broadcast %cst_11 : f32 to vector<128x128xf32>
    %11 = arith.maximumf %8, %10 : vector<128x128xf32>
    %12 = arith.truncf %11 : vector<128x128xf32> to vector<128x128xbf16>
    %cst_12 = arith.constant dense<0.000000e+00> : vector<128x128xf32>
    %13 = tpu.matmul %12, %0, %cst_12 {dimension_numbers = #tpu.dot_dimension_numbers<[1], [0], [0], [1], [0, 0, 1, 1], [], []>} : vector<128x128xbf16>, vector<128x128xbf16>, vector<128x128xf32> -> vector<128x128xf32>
    %14 = vector.broadcast %1 : vector<1x128xf32> to vector<128x128xf32>
    %15 = arith.addf %13, %14 : vector<128x128xf32>
    %c0_13 = arith.constant 0 : index
    %c128 = arith.constant 128 : index
    %16 = vector.load %arg10[%c0_13, %c128] : memref<128x640xf32, #tpu.memory_space<vmem>>, vector<128x128xf32>
    tpu.vector_store %arg10[%c0_13, %c128], %15 {strides = array<i32>} : memref<128x640xf32, #tpu.memory_space<vmem>>, vector<128x128xf32>,
    %c0_14 = arith.constant 0 : index
    %c0_15 = arith.constant 0 : index
    %17 = vector.load %arg4[%c0_14, %c0_15] : memref<128x128xbf16, #tpu.memory_space<vmem>>, vector<128x128xbf16>
    %c0_16 = arith.constant 0 : index
    %c0_17 = arith.constant 0 : index
    %18 = vector.load %arg5[%c0_16, %c0_17] : memref<1x128xf32, #tpu.memory_space<vmem>>, vector<1x128xf32>
    %cst_18 = arith.constant dense<0.000000e+00> : vector<128x128xf32>
    %19 = tpu.matmul %12, %17, %cst_18 {dimension_numbers = #tpu.dot_dimension_numbers<[1], [0], [0], [1], [0, 0, 1, 1], [], []>} : vector<128x128xbf16>, vector<128x128xbf16>, vector<128x128xf32> -> vector<128x128xf32>
    %20 = vector.broadcast %18 : vector<1x128xf32> to vector<128x128xf32>
    %21 = arith.addf %19, %20 : vector<128x128xf32>
    %c0_19 = arith.constant 0 : index
    %c256 = arith.constant 256 : index
    %22 = vector.load %arg10[%c0_19, %c256] : memref<128x640xf32, #tpu.memory_space<vmem>>, vector<128x128xf32>
    tpu.vector_store %arg10[%c0_19, %c256], %21 {strides = array<i32>} : memref<128x640xf32, #tpu.memory_space<vmem>>, vector<128x128xf32>,
    %cst_20 = arith.constant 0.000000e+00 : f32
    %23 = vector.broadcast %cst_20 : f32 to vector<128x128xf32>
    %24 = arith.maximumf %21, %23 : vector<128x128xf32>
    %25 = arith.truncf %24 : vector<128x128xf32> to vector<128x128xbf16>
    %cst_21 = arith.constant dense<0.000000e+00> : vector<128x128xf32>
    %26 = tpu.matmul %25, %0, %cst_21 {dimension_numbers = #tpu.dot_dimension_numbers<[1], [0], [0], [1], [0, 0, 1, 1], [], []>} : vector<128x128xbf16>, vector<128x128xbf16>, vector<128x128xf32> -> vector<128x128xf32>
    %27 = vector.broadcast %1 : vector<1x128xf32> to vector<128x128xf32>
    %28 = arith.addf %26, %27 : vector<128x128xf32>
    %c0_22 = arith.constant 0 : index
    %c384 = arith.constant 384 : index
    %29 = vector.load %arg10[%c0_22, %c384] : memref<128x640xf32, #tpu.memory_space<vmem>>, vector<128x128xf32>
    tpu.vector_store %arg10[%c0_22, %c384], %28 {strides = array<i32>} : memref<128x640xf32, #tpu.memory_space<vmem>>, vector<128x128xf32>,
    %c0_23 = arith.constant 0 : index
    %c0_24 = arith.constant 0 : index
    %30 = vector.load %arg6[%c0_23, %c0_24] : memref<128x128xbf16, #tpu.memory_space<vmem>>, vector<128x128xbf16>
    %c0_25 = arith.constant 0 : index
    %c0_26 = arith.constant 0 : index
    %31 = vector.load %arg7[%c0_25, %c0_26] : memref<1x128xf32, #tpu.memory_space<vmem>>, vector<1x128xf32>
    %cst_27 = arith.constant dense<0.000000e+00> : vector<128x128xf32>
    %32 = tpu.matmul %25, %30, %cst_27 {dimension_numbers = #tpu.dot_dimension_numbers<[1], [0], [0], [1], [0, 0, 1, 1], [], []>} : vector<128x128xbf16>, vector<128x128xbf16>, vector<128x128xf32> -> vector<128x128xf32>
    %33 = vector.broadcast %31 : vector<1x128xf32> to vector<128x128xf32>
    %34 = arith.addf %32, %33 : vector<128x128xf32>
    %c0_28 = arith.constant 0 : index
    %c512 = arith.constant 512 : index
    %35 = vector.load %arg10[%c0_28, %c512] : memref<128x640xf32, #tpu.memory_space<vmem>>, vector<128x128xf32>
    tpu.vector_store %arg10[%c0_28, %c512], %34 {strides = array<i32>} : memref<128x640xf32, #tpu.memory_space<vmem>>, vector<128x128xf32>,
    return
  }
  func.func @transform_0(%arg0: i32) -> (i32, i32) {
    %c0_i32 = arith.constant 0 : i32
    %c0_i32_0 = arith.constant 0 : i32
    return %arg0, %c0_i32 : i32, i32
  }
  func.func @transform_1(%arg0: i32) -> (i32, i32) {
    %c0_i32 = arith.constant 0 : i32
    %c0_i32_0 = arith.constant 0 : i32
    %c0_i32_1 = arith.constant 0 : i32
    return %c0_i32, %c0_i32_0 : i32, i32
  }
  func.func @transform_2(%arg0: i32) -> (i32, i32) {
    %c0_i32 = arith.constant 0 : i32
    %c0_i32_0 = arith.constant 0 : i32
    %c0_i32_1 = arith.constant 0 : i32
    return %c0_i32, %c0_i32_0 : i32, i32
  }
  func.func @transform_3(%arg0: i32) -> (i32, i32) {
    %c0_i32 = arith.constant 0 : i32
    %c0_i32_0 = arith.constant 0 : i32
    %c0_i32_1 = arith.constant 0 : i32
    return %c0_i32, %c0_i32_0 : i32, i32
  }
  func.func @transform_4(%arg0: i32) -> (i32, i32) {
    %c0_i32 = arith.constant 0 : i32
    %c0_i32_0 = arith.constant 0 : i32
    %c0_i32_1 = arith.constant 0 : i32
    return %c0_i32, %c0_i32_0 : i32, i32
  }
  func.func @transform_5(%arg0: i32) -> (i32, i32) {
    %c0_i32 = arith.constant 0 : i32
    %c0_i32_0 = arith.constant 0 : i32
    %c0_i32_1 = arith.constant 0 : i32
    return %c0_i32, %c0_i32_0 : i32, i32
  }
  func.func @transform_6(%arg0: i32) -> (i32, i32) {
    %c0_i32 = arith.constant 0 : i32
    %c0_i32_0 = arith.constant 0 : i32
    %c0_i32_1 = arith.constant 0 : i32
    return %c0_i32, %c0_i32_0 : i32, i32
  }
  func.func @transform_7(%arg0: i32) -> (i32, i32) {
    %c0_i32 = arith.constant 0 : i32
    %c0_i32_0 = arith.constant 0 : i32
    %c0_i32_1 = arith.constant 0 : i32
    return %c0_i32, %c0_i32_0 : i32, i32
  }
  func.func @transform_8(%arg0: i32) -> (i32, i32) {
    %c0_i32 = arith.constant 0 : i32
    %c0_i32_0 = arith.constant 0 : i32
    %c0_i32_1 = arith.constant 0 : i32
    return %c0_i32, %c0_i32_0 : i32, i32
  }
  func.func @transform_9(%arg0: i32) -> (i32, i32) {
    %c0_i32 = arith.constant 0 : i32
    %c0_i32_0 = arith.constant 0 : i32
    return %arg0, %c0_i32 : i32, i32
  }
}

</mosaic_0001>

<llo_original>
// kernel: mlp_forward.1
$region0: #{mlp_forward.1}
  #allocation0 [shape = 'u32[]', space=smem, size = 0x4, offset = 0x4, fixed_abs, tag = 'smem constant byte address 0x4 - core index']
  #allocation1 [shape = 'u32[72,128]{1,0:T(1,128)}', space=vmem, size = 0x9000, scoped, tag = 'internal scratch']
  %s0 = inlined_call_operand.vmem [shape: f32[256,32], index: 0, kind: input, shape index: {}]
  %s1 = inlined_call_operand.vmem [shape: bf16[32,128], index: 1, kind: input, shape index: {}]
  %s2 = inlined_call_operand.vmem [shape: f32[1,128], index: 2, kind: input, shape index: {}]
  %s3 = inlined_call_operand.vmem [shape: bf16[128,128], index: 3, kind: input, shape index: {}]
  %s4 = inlined_call_operand.vmem [shape: f32[1,128], index: 4, kind: input, shape index: {}]
  %s5 = inlined_call_operand.vmem [shape: bf16[128,128], index: 5, kind: input, shape index: {}]
  %s6 = inlined_call_operand.vmem [shape: f32[1,128], index: 6, kind: input, shape index: {}]
  %s7 = inlined_call_operand.vmem [shape: bf16[128,128], index: 7, kind: input, shape index: {}]
  %s8 = inlined_call_operand.vmem [shape: f32[1,128], index: 8, kind: input, shape index: {}]
  %s9 = inlined_call_operand.vmem [shape: f32[256,640], index: 9, kind: output, shape index: {}]
  %s10 = sld [smem:[#allocation0]]
  $region69: #{mlp_forward.1} parent=0
    _
  %s12 = ssub.s32 1, %s10
  %s13 = scalar_select 0, %s12, %s10
  loop: start=0, step=1, limit=4
  $region2: #{mlp_forward.1} parent=0 // loop_pre_header
    _
  $region3: #{mlp_forward.1} parent=0 // loop_header
    %s15 = sphi 0, %s19
    %p16 = scmp.ge.s32.totalorder %s15, 4
    %s25 = sphi 0, %s27
    %s28 = sphi 0, %s25
    %s29 = sphi 0, %s28
    %s45 = sphi 0, %s29
    %s49 = sphi 0, %s49
    %s51 = sphi 0, %s49
    %s52 = sphi 0, %s51
    %s66 = sphi 0, %s52
    %s70 = sphi 0, %s70
    %s72 = sphi 0, %s70
    %s73 = sphi 0, %s72
    %s87 = sphi 0, %s73
    %s91 = sphi 0, %s91
    %s93 = sphi 0, %s91
    %s94 = sphi 0, %s93
    %s108 = sphi 0, %s94
    %s112 = sphi 0, %s112
    %s114 = sphi 0, %s112
    %s115 = sphi 0, %s114
    %s129 = sphi 0, %s115
    %s133 = sphi 0, %s133
    %s135 = sphi 0, %s133
    %s136 = sphi 0, %s135
    %s150 = sphi 0, %s136
    %s154 = sphi 0, %s154
    %s156 = sphi 0, %s154
    %s157 = sphi 0, %s156
    %s171 = sphi 0, %s157
    %s175 = sphi 0, %s175
    %s177 = sphi 0, %s175
    %s178 = sphi 0, %s177
    %s192 = sphi 0, %s178
    %s196 = sphi 0, %s196
    %s198 = sphi 0, %s196
    %s199 = sphi 0, %s198
    %s213 = sphi 0, %s199
    %s219 = sphi 0, %s221
    %s222 = sphi 0, %s219
    %s223 = sphi 0, %s222
    %s239 = sphi 0, %s223
  $region4: #{mlp_forward.1} parent=0 // loop_header_branch
    %18 = sbr.rel (%p16) target = $region8
  $region5: #{mlp_forward.1} parent=0 // loop_body
    %s20 = ssub.s32 %s15, 1
    %s21 = ssub.s32 %s15, 2
    %s22 = sadd.s32 %s15, 1
    %s23 = ssub.s32 %s15, %s22
    %p24 = scmp.eq.s32.totalorder %s23, 0
    %s26 = sadd.s32 %s25, 1
    %s27 = scalar_select %p24, %s25, %s26
    %p30 = pneg %p24
    %p31 = scmp.eq.s32.totalorder %s15, 1
    %p32 = por %p30, %p31
    %p33 = scmp.ne.s32.totalorder %s25, %s28
    %p34 = scmp.eq.s32.totalorder %s15, 0
    %p35 = por %p33, %p34
    %p36 = scmp.ne.s32.totalorder %s25, %s28
    %p37 = scmp.eq.s32.totalorder %s20, 1
    %p38 = por %p36, %p37
    %p39 = scmp.ne.s32.totalorder %s28, %s29
    %p40 = scmp.eq.s32.totalorder %s20, 0
    %p41 = por %p39, %p40
    %p42 = scmp.ne.s32.totalorder %s28, %s29
    %p43 = scmp.eq.s32.totalorder %s21, 1
    %p44 = por %p42, %p43
    %p46 = scmp.ne.s32.totalorder %s29, %s45
    %p47 = scmp.eq.s32.totalorder %s21, 0
    %p48 = por %p46, %p47
    %s50 = sadd.s32 %s49, 1
    %p53 = scmp.eq.s32.totalorder %s15, 1
    %p54 = scmp.ne.s32.totalorder %s49, %s51
    %p55 = scmp.eq.s32.totalorder %s15, 0
    %p56 = por %p54, %p55
    %p57 = scmp.ne.s32.totalorder %s49, %s51
    %p58 = scmp.eq.s32.totalorder %s20, 1
    %p59 = por %p57, %p58
    %p60 = scmp.ne.s32.totalorder %s51, %s52
    %p61 = scmp.eq.s32.totalorder %s20, 0
    %p62 = por %p60, %p61
    %p63 = scmp.ne.s32.totalorder %s51, %s52
    %p64 = scmp.eq.s32.totalorder %s21, 1
    %p65 = por %p63, %p64
    %p67 = scmp.ne.s32.totalorder %s52, %s66
    %p68 = scmp.eq.s32.totalorder %s21, 0
    %p69 = por %p67, %p68
    %s71 = sadd.s32 %s70, 1
    %p74 = scmp.eq.s32.totalorder %s15, 1
    %p75 = scmp.ne.s32.totalorder %s70, %s72
    %p76 = scmp.eq.s32.totalorder %s15, 0
    %p77 = por %p75, %p76
    %p78 = scmp.ne.s32.totalorder %s70, %s72
    %p79 = scmp.eq.s32.totalorder %s20, 1
    %p80 = por %p78, %p79
    %p81 = scmp.ne.s32.totalorder %s72, %s73
    %p82 = scmp.eq.s32.totalorder %s20, 0
    %p83 = por %p81, %p82
    %p84 = scmp.ne.s32.totalorder %s72, %s73
    %p85 = scmp.eq.s32.totalorder %s21, 1
    %p86 = por %p84, %p85
    %p88 = scmp.ne.s32.totalorder %s73, %s87
    %p89 = scmp.eq.s32.totalorder %s21, 0
    %p90 = por %p88, %p89
    %s92 = sadd.s32 %s91, 1
    %p95 = scmp.eq.s32.totalorder %s15, 1
    %p96 = scmp.ne.s32.totalorder %s91, %s93
    %p97 = scmp.eq.s32.totalorder %s15, 0
    %p98 = por %p96, %p97
    %p99 = scmp.ne.s32.totalorder %s91, %s93
    %p100 = scmp.eq.s32.totalorder %s20, 1
    %p101 = por %p99, %p100
    %p102 = scmp.ne.s32.totalorder %s93, %s94
    %p103 = scmp.eq.s32.totalorder %s20, 0
    %p104 = por %p102, %p103
    %p105 = scmp.ne.s32.totalorder %s93, %s94
    %p106 = scmp.eq.s32.totalorder %s21, 1
    %p107 = por %p105, %p106
    %p109 = scmp.ne.s32.totalorder %s94, %s108
    %p110 = scmp.eq.s32.totalorder %s21, 0
    %p111 = por %p109, %p110
    %s113 = sadd.s32 %s112, 1
    %p116 = scmp.eq.s32.totalorder %s15, 1
    %p117 = scmp.ne.s32.totalorder %s112, %s114
    %p118 = scmp.eq.s32.totalorder %s15, 0
    %p119 = por %p117, %p118
    %p120 = scmp.ne.s32.totalorder %s112, %s114
    %p121 = scmp.eq.s32.totalorder %s20, 1
    %p122 = por %p120, %p121
    %p123 = scmp.ne.s32.totalorder %s114, %s115
    %p124 = scmp.eq.s32.totalorder %s20, 0
    %p125 = por %p123, %p124
    %p126 = scmp.ne.s32.totalorder %s114, %s115
    %p127 = scmp.eq.s32.totalorder %s21, 1
    %p128 = por %p126, %p127
    %p130 = scmp.ne.s32.totalorder %s115, %s129
    %p131 = scmp.eq.s32.totalorder %s21, 0
    %p132 = por %p130, %p131
    %s134 = sadd.s32 %s133, 1
    %p137 = scmp.eq.s32.totalorder %s15, 1
    %p138 = scmp.ne.s32.totalorder %s133, %s135
    %p139 = scmp.eq.s32.totalorder %s15, 0
    %p140 = por %p138, %p139
    %p141 = scmp.ne.s32.totalorder %s133, %s135
    %p142 = scmp.eq.s32.totalorder %s20, 1
    %p143 = por %p141, %p142
    %p144 = scmp.ne.s32.totalorder %s135, %s136
    %p145 = scmp.eq.s32.totalorder %s20, 0
    %p146 = por %p144, %p145
    %p147 = scmp.ne.s32.totalorder %s135, %s136
    %p148 = scmp.eq.s32.totalorder %s21, 1
    %p149 = por %p147, %p148
    %p151 = scmp.ne.s32.totalorder %s136, %s150
    %p152 = scmp.eq.s32.totalorder %s21, 0
    %p153 = por %p151, %p152
    %s155 = sadd.s32 %s154, 1
    %p158 = scmp.eq.s32.totalorder %s15, 1
    %p159 = scmp.ne.s32.totalorder %s154, %s156
    %p160 = scmp.eq.s32.totalorder %s15, 0
    %p161 = por %p159, %p160
    %p162 = scmp.ne.s32.totalorder %s154, %s156
    %p163 = scmp.eq.s32.totalorder %s20, 1
    %p164 = por %p162, %p163
    %p165 = scmp.ne.s32.totalorder %s156, %s157
    %p166 = scmp.eq.s32.totalorder %s20, 0
    %p167 = por %p165, %p166
    %p168 = scmp.ne.s32.totalorder %s156, %s157
    %p169 = scmp.eq.s32.totalorder %s21, 1
    %p170 = por %p168, %p169
    %p172 = scmp.ne.s32.totalorder %s157, %s171
    %p173 = scmp.eq.s32.totalorder %s21, 0
    %p174 = por %p172, %p173
    %s176 = sadd.s32 %s175, 1
    %p179 = scmp.eq.s32.totalorder %s15, 1
    %p180 = scmp.ne.s32.totalorder %s175, %s177
    %p181 = scmp.eq.s32.totalorder %s15, 0
    %p182 = por %p180, %p181
    %p183 = scmp.ne.s32.totalorder %s175, %s177
    %p184 = scmp.eq.s32.totalorder %s20, 1
    %p185 = por %p183, %p184
    %p186 = scmp.ne.s32.totalorder %s177, %s178
    %p187 = scmp.eq.s32.totalorder %s20, 0
    %p188 = por %p186, %p187
    %p189 = scmp.ne.s32.totalorder %s177, %s178
    %p190 = scmp.eq.s32.totalorder %s21, 1
    %p191 = por %p189, %p190
    %p193 = scmp.ne.s32.totalorder %s178, %s192
    %p194 = scmp.eq.s32.totalorder %s21, 0
    %p195 = por %p193, %p194
    %s197 = sadd.s32 %s196, 1
    %p200 = scmp.eq.s32.totalorder %s15, 1
    %p201 = scmp.ne.s32.totalorder %s196, %s198
    %p202 = scmp.eq.s32.totalorder %s15, 0
    %p203 = por %p201, %p202
    %p204 = scmp.ne.s32.totalorder %s196, %s198
    %p205 = scmp.eq.s32.totalorder %s20, 1
    %p206 = por %p204, %p205
    %p207 = scmp.ne.s32.totalorder %s198, %s199
    %p208 = scmp.eq.s32.totalorder %s20, 0
    %p209 = por %p207, %p208
    %p210 = scmp.ne.s32.totalorder %s198, %s199
    %p211 = scmp.eq.s32.totalorder %s21, 1
    %p212 = por %p210, %p211
    %p214 = scmp.ne.s32.totalorder %s199, %s213
    %p215 = scmp.eq.s32.totalorder %s21, 0
    %p216 = por %p214, %p215
    %s217 = ssub.s32 %s15, %s22
    %p218 = scmp.eq.s32.totalorder %s217, 0
    %s220 = sadd.s32 %s219, 1
    %s221 = scalar_select %p218, %s219, %s220
    %p224 = pneg %p218
    %p225 = scmp.eq.s32.totalorder %s15, 1
    %p226 = por %p224, %p225
    %p227 = scmp.ne.s32.totalorder %s219, %s222
    %p228 = scmp.eq.s32.totalorder %s15, 0
    %p229 = por %p227, %p228
    %p230 = scmp.ne.s32.totalorder %s219, %s222
    %p231 = scmp.eq.s32.totalorder %s20, 1
    %p232 = por %p230, %p231
    %p233 = scmp.ne.s32.totalorder %s222, %s223
    %p234 = scmp.eq.s32.totalorder %s20, 0
    %p235 = por %p233, %p234
    %p236 = scmp.ne.s32.totalorder %s222, %s223
    %p237 = scmp.eq.s32.totalorder %s21, 1
    %p238 = por %p236, %p237
    %p240 = scmp.ne.s32.totalorder %s223, %s239
    %p241 = scmp.eq.s32.totalorder %s21, 0
    %p242 = por %p240, %p241
    %p243 = scmp.le.s32.totalorder 1, %s15
    %p244 = scmp.lt.s32.totalorder %s15, 3
    %p245 = pnand %p243, %p244
    %p246 = pneg %p245
    // Predicated region
    $region9: #{mlp_forward.1} parent=5 // pred_check
      _
    $region10: #{mlp_forward.1} parent=5 // pred_check_branch
      %248 = sbr.rel (%p245) target = $region12
    $region11: #{mlp_forward.1} parent=5 // pred_region
      %s249 = ssub.s32 %s15, 1
      // Predicated region
      $region13: #{mlp_forward.1} parent=11 // pred_check
        %p250 = pneg %p62
      $region14: #{mlp_forward.1} parent=11 // pred_check_branch
        %252 = sbr.rel (%p250) target = $region16
      $region15: #{mlp_forward.1} parent=11 // pred_region
        _
      $region16: #{mlp_forward.1} parent=11 // pred_fallthru
        _
      // Predicated region
      $region17: #{mlp_forward.1} parent=11 // pred_check
        %p253 = pneg %p83
      $region18: #{mlp_forward.1} parent=11 // pred_check_branch
        %255 = sbr.rel (%p253) target = $region20
      $region19: #{mlp_forward.1} parent=11 // pred_region
        _
      $region20: #{mlp_forward.1} parent=11 // pred_fallthru
        _
      // Predicated region
      $region21: #{mlp_forward.1} parent=11 // pred_check
        %p256 = pneg %p104
      $region22: #{mlp_forward.1} parent=11 // pred_check_branch
        %258 = sbr.rel (%p256) target = $region24
      $region23: #{mlp_forward.1} parent=11 // pred_region
        _
      $region24: #{mlp_forward.1} parent=11 // pred_fallthru
        _
      // Predicated region
      $region25: #{mlp_forward.1} parent=11 // pred_check
        %p259 = pneg %p125
      $region26: #{mlp_forward.1} parent=11 // pred_check_branch
        %261 = sbr.rel (%p259) target = $region28
      $region27: #{mlp_forward.1} parent=11 // pred_region
        _
      $region28: #{mlp_forward.1} parent=11 // pred_fallthru
        _
      // Predicated region
      $region29: #{mlp_forward.1} parent=11 // pred_check
        %p262 = pneg %p146
      $region30: #{mlp_forward.1} parent=11 // pred_check_branch
        %264 = sbr.rel (%p262) target = $region32
      $region31: #{mlp_forward.1} parent=11 // pred_region
        _
      $region32: #{mlp_forward.1} parent=11 // pred_fallthru
        _
      // Predicated region
      $region33: #{mlp_forward.1} parent=11 // pred_check
        %p265 = pneg %p167
      $region34: #{mlp_forward.1} parent=11 // pred_check_branch
        %267 = sbr.rel (%p265) target = $region36
      $region35: #{mlp_forward.1} parent=11 // pred_region
        _
      $region36: #{mlp_forward.1} parent=11 // pred_fallthru
        _
      // Predicated region
      $region37: #{mlp_forward.1} parent=11 // pred_check
        %p268 = pneg %p188
      $region38: #{mlp_forward.1} parent=11 // pred_check_branch
        %270 = sbr.rel (%p268) target = $region40
      $region39: #{mlp_forward.1} parent=11 // pred_region
        _
      $region40: #{mlp_forward.1} parent=11 // pred_fallthru
        _
      // Predicated region
      $region41: #{mlp_forward.1} parent=11 // pred_check
        %p271 = pneg %p209
      $region42: #{mlp_forward.1} parent=11 // pred_check_branch
        %273 = sbr.rel (%p271) target = $region44
      $region43: #{mlp_forward.1} parent=11 // pred_region
        _
      $region44: #{mlp_forward.1} parent=11 // pred_fallthru
        _
    $region12: #{mlp_forward.1} parent=5 // pred_fallthru
      _
    %p274 = scmp.lt.s32.totalorder %s15, 2
    // Predicated region
    $region45: #{mlp_forward.1} parent=5 // pred_check
      %p275 = pneg %p274
    $region46: #{mlp_forward.1} parent=5 // pred_check_branch
      %277 = sbr.rel (%p275) target = $region48
    $region47: #{mlp_forward.1} parent=5 // pred_region
      // Predicated region
      $region49: #{mlp_forward.1} parent=47 // pred_check
        %p278 = pneg %p35
      $region50: #{mlp_forward.1} parent=47 // pred_check_branch
        %280 = sbr.rel (%p278) target = $region52
      $region51: #{mlp_forward.1} parent=47 // pred_region
        %s281 = smul.u32 16, %s15
        %p282 = scmp.lt.s32.totalorder %s281, 31
        %s283 = scalar_select %p282, %s281, 31
        %s284 = smul.addr %s283, 8
        %s285 = scalar_lea.vmem %s0, %s284
        %s286 = smul.u32 16, %s15
      $region52: #{mlp_forward.1} parent=47 // pred_fallthru
        _
    $region48: #{mlp_forward.1} parent=5 // pred_fallthru
      _
    %p287 = scmp.le.s32.totalorder 1, %s15
    %p288 = scmp.lt.s32.totalorder %s15, 3
    %p289 = pnand %p287, %p288
    %p290 = pneg %p289
    // Predicated region
    $region53: #{mlp_forward.1} parent=5 // pred_check
      _
    $region54: #{mlp_forward.1} parent=5 // pred_check_branch
      %292 = sbr.rel (%p289) target = $region56
    $region55: #{mlp_forward.1} parent=5 // pred_region
      %s293 = ssub.s32 %s15, 1
      %s294 = smul.u32 16, %s20
      %p295 = scmp.lt.s32.totalorder %s294, 31
      %s296 = scalar_select %p295, %s294, 31
      %s297 = smul.addr %s296, 8
      %s298 = scalar_lea.vmem %s0, %s297
      %p299 = pneg %p41
      %p300 = pneg %p38
      %p301 = pneg %p62
      %p302 = pneg %p59
      %p303 = pneg %p83
      %p304 = pneg %p80
      %p305 = pneg %p104
      %p306 = pneg %p101
      %p307 = pneg %p125
      %p308 = pneg %p122
      %p309 = pneg %p146
      %p310 = pneg %p143
      %p311 = pneg %p167
      %p312 = pneg %p164
      %p313 = pneg %p188
      %p314 = pneg %p185
      %p315 = pneg %p209
      %p316 = pneg %p206
      %p317 = pneg %p235
      %p318 = pneg %p232
      %s319 = smul.u32 16, %s20
      %p320 = scmp.lt.s32.totalorder %s319, 31
      %s321 = scalar_select %p320, %s319, 31
      %s322 = smul.addr %s321, 5
      %s323 = smul.addr %s322, 8
      %s324 = scalar_lea.vmem %s9, %s323
      %s325 = smul.u32 16, %s20
      %p326 = scmp.lt.s32.totalorder %s325, 31
      %s327 = scalar_select %p326, %s325, 31
      %s328 = smul.addr %s327, 8
      %s329 = scalar_lea.vmem %s0, %s328
      %s330 = smul.u32 16, %s20
      %s331 = smul.u32 16, %s20
      %p332 = scmp.lt.s32.totalorder %s331, 31
      %s333 = scalar_select %p332, %s331, 31
      %s334 = smul.addr %s333, 5
      %s335 = smul.addr %s334, 8
      %s336 = scalar_lea.vmem %s9, %s335
      %s337 = smul.u32 16, %s20
      %v339 = vld [vmem:[%s7] sm:$0xf]
      %v340 = vld [vmem:[%s7 + $0x4] sm:$0xf]
      %v341 = vld [vmem:[%s7 + $0x8] sm:$0xf]
      %v342 = vld [vmem:[%s7 + $0xc] sm:$0xf]
      %v343 = vld [vmem:[%s7 + $0x10] sm:$0xf]
      %v344 = vld [vmem:[%s7 + $0x14] sm:$0xf]
      %v345 = vld [vmem:[%s7 + $0x18] sm:$0xf]
      %v346 = vld [vmem:[%s7 + $0x1c] sm:$0xf]
      %v347 = vld [vmem:[%s7 + $0x20] sm:$0xf]
      %v348 = vld [vmem:[%s7 + $0x24] sm:$0xf]
      %v349 = vld [vmem:[%s7 + $0x28] sm:$0xf]
      %v350 = vld [vmem:[%s7 + $0x2c] sm:$0xf]
      %v351 = vld [vmem:[%s7 + $0x30] sm:$0xf]
      %v352 = vld [vmem:[%s7 + $0x34] sm:$0xf]
      %v353 = vld [vmem:[%s7 + $0x38] sm:$0xf]
      %v354 = vld [vmem:[%s7 + $0x3c] sm:$0xf]
      %v355 = vld [vmem:[%s8] sm:$0x1]
      %v356 = vld [vmem:[%s329] sm:$0xff]
      %v357 = vld [vmem:[%s329 + $0x8] sm:$0xff]
      %v358 = vld [vmem:[%s329 + $0x10] sm:$0xff]
      %v359 = vld [vmem:[%s329 + $0x18] sm:$0xff]
      %v360 = vld [vmem:[%s329 + $0x20] sm:$0xff]
      %v361 = vld [vmem:[%s329 + $0x28] sm:$0xff]
      %v362 = vld [vmem:[%s329 + $0x30] sm:$0xff]
      %v363 = vld [vmem:[%s329 + $0x38] sm:$0xff]
      %v364 = vld [vmem:[%s329 + $0x40] sm:$0xff]
      %v365 = vld [vmem:[%s329 + $0x48] sm:$0xff]
      %v366 = vld [vmem:[%s329 + $0x50] sm:$0xff]
      %v367 = vld [vmem:[%s329 + $0x58] sm:$0xff]
      %v368 = vld [vmem:[%s329 + $0x60] sm:$0xff]
      %v369 = vld [vmem:[%s329 + $0x68] sm:$0xff]
      %v370 = vld [vmem:[%s329 + $0x70] sm:$0xff]
      %v371 = vld [vmem:[%s329 + $0x78] sm:$0xff]
      %v372 = vpack.c.bf16 %v357, %v356
      %v373 = vpack.c.bf16 %v359, %v358
      %v374 = vpack.c.bf16 %v361, %v360
      %v375 = vpack.c.bf16 %v363, %v362
      %v376 = vpack.c.bf16 %v365, %v364
      %v377 = vpack.c.bf16 %v367, %v366
      %v378 = vpack.c.bf16 %v369, %v368
      %v379 = vpack.c.bf16 %v371, %v370
      %v380 = vld [vmem:[%s1] sm:$0xf]
      %v381 = vld [vmem:[%s1 + $0x4] sm:$0xf]
      %v382 = vld [vmem:[%s1 + $0x8] sm:$0xf]
      %v383 = vld [vmem:[%s1 + $0xc] sm:$0xf]
      %v384 = vld [vmem:[%s2] sm:$0x1]
      %v386 = vperm.slane %v384, 0
      %v392 = vunpack.c.l.b16 %v380
      %v393 = vunpack.c.l.b16 %v381
      %v394 = vunpack.c.l.b16 %v382
      %v395 = vunpack.c.l.b16 %v383
      %v396 = vpack.c.b16 %v393, %v392
      %v397 = vpack.c.b16 %v395, %v394
      %vm400 = vcmask 261120
      %v402 = vsel %vm400, %v372, 0
      %v405 = vsel %vm400, %v373, 0
      %v408 = vsel %vm400, %v374, 0
      %v411 = vsel %vm400, %v375, 0
      %v414 = vsel %vm400, %v376, 0
      %v417 = vsel %vm400, %v377, 0
      %v420 = vsel %vm400, %v378, 0
      %v423 = vsel %vm400, %v379, 0
      %425 = vmatpush.bf16.msra.mxu0 0
      %426 = vmatpush.bf16.msra.mxu0 0
      %427 = vmatpush.bf16.msra.mxu0 0
      %428 = vmatpush.bf16.msra.mxu0 0
      %429 = vmatpush.bf16.msra.mxu0 0
      %430 = vmatpush.bf16.msra.mxu0 0
      %431 = vmatpush.bf16.msra.mxu0 %v397
      %432 = vmatpush.bf16.msra.mxu0 %v396
      %433 = vmatmul.bf16.gmra.mxu0 %v402
      %v434 = vpop.f32.mrf.mxu0
      %v435 = vadd.f32 %v386, %v434
      %v436 = vpop.f32.mrf.mxu0
      %v437 = vadd.f32 %v386, %v436
      %438 = vmatmul.bf16.gmra.mxu0 %v405
      %v439 = vpop.f32.mrf.mxu0
      %v440 = vadd.f32 %v386, %v439
      %v441 = vpop.f32.mrf.mxu0
      %v442 = vadd.f32 %v386, %v441
      %443 = vmatmul.bf16.gmra.mxu0 %v408
      %v444 = vpop.f32.mrf.mxu0
      %v445 = vadd.f32 %v386, %v444
      %v446 = vpop.f32.mrf.mxu0
      %v447 = vadd.f32 %v386, %v446
      %448 = vmatmul.bf16.gmra.mxu0 %v411
      %v449 = vpop.f32.mrf.mxu0
      %v450 = vadd.f32 %v386, %v449
      %v451 = vpop.f32.mrf.mxu0
      %v452 = vadd.f32 %v386, %v451
      %453 = vmatmul.bf16.gmra.mxu0 %v414
      %v454 = vpop.f32.mrf.mxu0
      %v455 = vadd.f32 %v386, %v454
      %v456 = vpop.f32.mrf.mxu0
      %v457 = vadd.f32 %v386, %v456
      %458 = vmatmul.bf16.gmra.mxu0 %v417
      %v459 = vpop.f32.mrf.mxu0
      %v460 = vadd.f32 %v386, %v459
      %v461 = vpop.f32.mrf.mxu0
      %v462 = vadd.f32 %v386, %v461
      %463 = vmatmul.bf16.gmra.mxu0 %v420
      %v464 = vpop.f32.mrf.mxu0
      %v465 = vadd.f32 %v386, %v464
      %v466 = vpop.f32.mrf.mxu0
      %v467 = vadd.f32 %v386, %v466
      %468 = vmatmul.bf16.gmra.mxu0 %v423
      %v469 = vpop.f32.mrf.mxu0
      %v470 = vadd.f32 %v386, %v469
      %v471 = vpop.f32.mrf.mxu0
      %v472 = vadd.f32 %v386, %v471
      %473 = vdwg.mxu0
      %474 = vst [vmem:[%s336] sm:$0xff] %v435
      %475 = vst [vmem:[%s336 + $0x28] sm:$0xff] %v437
      %476 = vst [vmem:[%s336 + $0x50] sm:$0xff] %v440
      %477 = vst [vmem:[%s336 + $0x78] sm:$0xff] %v442
      %478 = vst [vmem:[%s336 + $0xa0] sm:$0xff] %v445
      %479 = vst [vmem:[%s336 + $0xc8] sm:$0xff] %v447
      %480 = vst [vmem:[%s336 + $0xf0] sm:$0xff] %v450
      %481 = vst [vmem:[%s336 + $0x118] sm:$0xff] %v452
      %482 = vst [vmem:[%s336 + $0x140] sm:$0xff] %v455
      %483 = vst [vmem:[%s336 + $0x168] sm:$0xff] %v457
      %484 = vst [vmem:[%s336 + $0x190] sm:$0xff] %v460
      %485 = vst [vmem:[%s336 + $0x1b8] sm:$0xff] %v462
      %486 = vst [vmem:[%s336 + $0x1e0] sm:$0xff] %v465
      %487 = vst [vmem:[%s336 + $0x208] sm:$0xff] %v467
      %488 = vst [vmem:[%s336 + $0x230] sm:$0xff] %v470
      %489 = vst [vmem:[%s336 + $0x258] sm:$0xff] %v472
      %v490 = vmax.f32 %v435, 0.0
      %v491 = vmax.f32 %v437, 0.0
      %v492 = vmax.f32 %v440, 0.0
      %v493 = vmax.f32 %v442, 0.0
      %v494 = vmax.f32 %v445, 0.0
      %v495 = vmax.f32 %v447, 0.0
      %v496 = vmax.f32 %v450, 0.0
      %v497 = vmax.f32 %v452, 0.0
      %v498 = vmax.f32 %v455, 0.0
      %v499 = vmax.f32 %v457, 0.0
      %v500 = vmax.f32 %v460, 0.0
      %v501 = vmax.f32 %v462, 0.0
      %v502 = vmax.f32 %v465, 0.0
      %v503 = vmax.f32 %v467, 0.0
      %v504 = vmax.f32 %v470, 0.0
      %v505 = vmax.f32 %v472, 0.0
      %v506 = vpack.c.bf16 %v491, %v490
      %v507 = vpack.c.bf16 %v493, %v492
      %v508 = vpack.c.bf16 %v495, %v494
      %v509 = vpack.c.bf16 %v497, %v496
      %v510 = vpack.c.bf16 %v499, %v498
      %v511 = vpack.c.bf16 %v501, %v500
      %v512 = vpack.c.bf16 %v503, %v502
      %v513 = vpack.c.bf16 %v505, %v504
      %v515 = vperm.slane %v355, 0
      %v533 = vunpack.c.l.b16 %v339
      %v534 = vunpack.c.l.b16 %v340
      %v535 = vunpack.c.l.b16 %v341
      %v536 = vunpack.c.l.b16 %v342
      %v537 = vunpack.c.l.b16 %v343
      %v538 = vunpack.c.l.b16 %v344
      %v539 = vunpack.c.l.b16 %v345
      %v540 = vunpack.c.l.b16 %v346
      %v541 = vunpack.c.l.b16 %v347
      %v542 = vunpack.c.l.b16 %v348
      %v543 = vunpack.c.l.b16 %v349
      %v544 = vunpack.c.l.b16 %v350
      %v545 = vunpack.c.l.b16 %v351
      %v546 = vunpack.c.l.b16 %v352
      %v547 = vunpack.c.l.b16 %v353
      %v548 = vunpack.c.l.b16 %v354
      %v549 = vpack.c.b16 %v534, %v533
      %v550 = vpack.c.b16 %v536, %v535
      %v551 = vpack.c.b16 %v538, %v537
      %v552 = vpack.c.b16 %v540, %v539
      %v553 = vpack.c.b16 %v542, %v541
      %v554 = vpack.c.b16 %v544, %v543
      %v555 = vpack.c.b16 %v546, %v545
      %v556 = vpack.c.b16 %v548, %v547
      %565 = vmatpush.bf16.msra.mxu0 %v556
      %566 = vmatpush.bf16.msra.mxu0 %v555
      %567 = vmatpush.bf16.msra.mxu0 %v554
      %568 = vmatpush.bf16.msra.mxu0 %v553
      %569 = vmatpush.bf16.msra.mxu0 %v552
      %570 = vmatpush.bf16.msra.mxu0 %v551
      %571 = vmatpush.bf16.msra.mxu0 %v550
      %572 = vmatpush.bf16.msra.mxu0 %v549
      %573 = vmatmul.bf16.gmra.mxu0 %v506
      %v574 = vpop.f32.mrf.mxu0
      %v575 = vadd.f32 %v515, %v574
      %v576 = vpop.f32.mrf.mxu0
      %v577 = vadd.f32 %v515, %v576
      %578 = vmatmul.bf16.gmra.mxu0 %v507
      %v579 = vpop.f32.mrf.mxu0
      %v580 = vadd.f32 %v515, %v579
      %v581 = vpop.f32.mrf.mxu0
      %v582 = vadd.f32 %v515, %v581
      %583 = vmatmul.bf16.gmra.mxu0 %v508
      %v584 = vpop.f32.mrf.mxu0
      %v585 = vadd.f32 %v515, %v584
      %v586 = vpop.f32.mrf.mxu0
      %v587 = vadd.f32 %v515, %v586
      %588 = vmatmul.bf16.gmra.mxu0 %v509
      %v589 = vpop.f32.mrf.mxu0
      %v590 = vadd.f32 %v515, %v589
      %v591 = vpop.f32.mrf.mxu0
      %v592 = vadd.f32 %v515, %v591
      %593 = vmatmul.bf16.gmra.mxu0 %v510
      %v594 = vpop.f32.mrf.mxu0
      %v595 = vadd.f32 %v515, %v594
      %v596 = vpop.f32.mrf.mxu0
      %v597 = vadd.f32 %v515, %v596
      %598 = vmatmul.bf16.gmra.mxu0 %v511
      %v599 = vpop.f32.mrf.mxu0
      %v600 = vadd.f32 %v515, %v599
      %v601 = vpop.f32.mrf.mxu0
      %v602 = vadd.f32 %v515, %v601
      %603 = vmatmul.bf16.gmra.mxu0 %v512
      %v604 = vpop.f32.mrf.mxu0
      %v605 = vadd.f32 %v515, %v604
      %v606 = vpop.f32.mrf.mxu0
      %v607 = vadd.f32 %v515, %v606
      %608 = vmatmul.bf16.gmra.mxu0 %v513
      %v609 = vpop.f32.mrf.mxu0
      %v610 = vadd.f32 %v515, %v609
      %v611 = vpop.f32.mrf.mxu0
      %v612 = vadd.f32 %v515, %v611
      %613 = vdwg.mxu0
      %614 = vst [vmem:[%s336 + $0x8] sm:$0xff] %v575
      %615 = vst [vmem:[%s336 + $0x30] sm:$0xff] %v577
      %616 = vst [vmem:[%s336 + $0x58] sm:$0xff] %v580
      %617 = vst [vmem:[%s336 + $0x80] sm:$0xff] %v582
      %618 = vst [vmem:[%s336 + $0xa8] sm:$0xff] %v585
      %619 = vst [vmem:[%s336 + $0xd0] sm:$0xff] %v587
      %620 = vst [vmem:[%s336 + $0xf8] sm:$0xff] %v590
      %621 = vst [vmem:[%s336 + $0x120] sm:$0xff] %v592
      %622 = vst [vmem:[%s336 + $0x148] sm:$0xff] %v595
      %623 = vst [vmem:[%s336 + $0x170] sm:$0xff] %v597
      %624 = vst [vmem:[%s336 + $0x198] sm:$0xff] %v600
      %625 = vst [vmem:[%s336 + $0x1c0] sm:$0xff] %v602
      %626 = vst [vmem:[%s336 + $0x1e8] sm:$0xff] %v605
      %627 = vst [vmem:[%s336 + $0x210] sm:$0xff] %v607
      %628 = vst [vmem:[%s336 + $0x238] sm:$0xff] %v610
      %629 = vst [vmem:[%s336 + $0x260] sm:$0xff] %v612
      %v630 = vld [vmem:[%s3] sm:$0xf]
      %v631 = vld [vmem:[%s3 + $0x4] sm:$0xf]
      %v632 = vld [vmem:[%s3 + $0x8] sm:$0xf]
      %v633 = vld [vmem:[%s3 + $0xc] sm:$0xf]
      %v634 = vld [vmem:[%s3 + $0x10] sm:$0xf]
      %v635 = vld [vmem:[%s3 + $0x14] sm:$0xf]
      %v636 = vld [vmem:[%s3 + $0x18] sm:$0xf]
      %v637 = vld [vmem:[%s3 + $0x1c] sm:$0xf]
      %v638 = vld [vmem:[%s3 + $0x20] sm:$0xf]
      %v639 = vld [vmem:[%s3 + $0x24] sm:$0xf]
      %v640 = vld [vmem:[%s3 + $0x28] sm:$0xf]
      %v641 = vld [vmem:[%s3 + $0x2c] sm:$0xf]
      %v642 = vld [vmem:[%s3 + $0x30] sm:$0xf]
      %v643 = vld [vmem:[%s3 + $0x34] sm:$0xf]
      %v644 = vld [vmem:[%s3 + $0x38] sm:$0xf]
      %v645 = vld [vmem:[%s3 + $0x3c] sm:$0xf]
      %v646 = vld [vmem:[%s4] sm:$0x1]
      %v648 = vperm.slane %v646, 0
      %v666 = vunpack.c.l.b16 %v630
      %v667 = vunpack.c.l.b16 %v631
      %v668 = vunpack.c.l.b16 %v632
      %v669 = vunpack.c.l.b16 %v633
      %v670 = vunpack.c.l.b16 %v634
      %v671 = vunpack.c.l.b16 %v635
      %v672 = vunpack.c.l.b16 %v636
      %v673 = vunpack.c.l.b16 %v637
      %v674 = vunpack.c.l.b16 %v638
      %v675 = vunpack.c.l.b16 %v639
      %v676 = vunpack.c.l.b16 %v640
      %v677 = vunpack.c.l.b16 %v641
      %v678 = vunpack.c.l.b16 %v642
      %v679 = vunpack.c.l.b16 %v643
      %v680 = vunpack.c.l.b16 %v644
      %v681 = vunpack.c.l.b16 %v645
      %v682 = vpack.c.b16 %v667, %v666
      %v683 = vpack.c.b16 %v669, %v668
      %v684 = vpack.c.b16 %v671, %v670
      %v685 = vpack.c.b16 %v673, %v672
      %v686 = vpack.c.b16 %v675, %v674
      %v687 = vpack.c.b16 %v677, %v676
      %v688 = vpack.c.b16 %v679, %v678
      %v689 = vpack.c.b16 %v681, %v680
      %698 = vmatpush.bf16.msra.mxu0 %v689
      %699 = vmatpush.bf16.msra.mxu0 %v688
      %700 = vmatpush.bf16.msra.mxu0 %v687
      %701 = vmatpush.bf16.msra.mxu0 %v686
      %702 = vmatpush.bf16.msra.mxu0 %v685
      %703 = vmatpush.bf16.msra.mxu0 %v684
      %704 = vmatpush.bf16.msra.mxu0 %v683
      %705 = vmatpush.bf16.msra.mxu0 %v682
      %706 = vmatmul.bf16.gmra.mxu0 %v506
      %v707 = vpop.f32.mrf.mxu0
      %v708 = vadd.f32 %v648, %v707
      %v709 = vpop.f32.mrf.mxu0
      %v710 = vadd.f32 %v648, %v709
      %711 = vmatmul.bf16.gmra.mxu0 %v507
      %v712 = vpop.f32.mrf.mxu0
      %v713 = vadd.f32 %v648, %v712
      %v714 = vpop.f32.mrf.mxu0
      %v715 = vadd.f32 %v648, %v714
      %716 = vmatmul.bf16.gmra.mxu0 %v508
      %v717 = vpop.f32.mrf.mxu0
      %v718 = vadd.f32 %v648, %v717
      %v719 = vpop.f32.mrf.mxu0
      %v720 = vadd.f32 %v648, %v719
      %721 = vmatmul.bf16.gmra.mxu0 %v509
      %v722 = vpop.f32.mrf.mxu0
      %v723 = vadd.f32 %v648, %v722
      %v724 = vpop.f32.mrf.mxu0
      %v725 = vadd.f32 %v648, %v724
      %726 = vmatmul.bf16.gmra.mxu0 %v510
      %v727 = vpop.f32.mrf.mxu0
      %v728 = vadd.f32 %v648, %v727
      %v729 = vpop.f32.mrf.mxu0
      %v730 = vadd.f32 %v648, %v729
      %731 = vmatmul.bf16.gmra.mxu0 %v511
      %v732 = vpop.f32.mrf.mxu0
      %v733 = vadd.f32 %v648, %v732
      %v734 = vpop.f32.mrf.mxu0
      %v735 = vadd.f32 %v648, %v734
      %736 = vmatmul.bf16.gmra.mxu0 %v512
      %v737 = vpop.f32.mrf.mxu0
      %v738 = vadd.f32 %v648, %v737
      %v739 = vpop.f32.mrf.mxu0
      %v740 = vadd.f32 %v648, %v739
      %741 = vmatmul.bf16.gmra.mxu0 %v513
      %v742 = vpop.f32.mrf.mxu0
      %v743 = vadd.f32 %v648, %v742
      %v744 = vpop.f32.mrf.mxu0
      %v745 = vadd.f32 %v648, %v744
      %746 = vdwg.mxu0
      %747 = vst [vmem:[%s336 + $0x10] sm:$0xff] %v708
      %748 = vst [vmem:[%s336 + $0x38] sm:$0xff] %v710
      %749 = vst [vmem:[%s336 + $0x60] sm:$0xff] %v713
      %750 = vst [vmem:[%s336 + $0x88] sm:$0xff] %v715
      %751 = vst [vmem:[%s336 + $0xb0] sm:$0xff] %v718
      %752 = vst [vmem:[%s336 + $0xd8] sm:$0xff] %v720
      %753 = vst [vmem:[%s336 + $0x100] sm:$0xff] %v723
      %754 = vst [vmem:[%s336 + $0x128] sm:$0xff] %v725
      %755 = vst [vmem:[%s336 + $0x150] sm:$0xff] %v728
      %756 = vst [vmem:[%s336 + $0x178] sm:$0xff] %v730
      %757 = vst [vmem:[%s336 + $0x1a0] sm:$0xff] %v733
      %758 = vst [vmem:[%s336 + $0x1c8] sm:$0xff] %v735
      %759 = vst [vmem:[%s336 + $0x1f0] sm:$0xff] %v738
      %760 = vst [vmem:[%s336 + $0x218] sm:$0xff] %v740
      %761 = vst [vmem:[%s336 + $0x240] sm:$0xff] %v743
      %762 = vst [vmem:[%s336 + $0x268] sm:$0xff] %v745
      %v763 = vmax.f32 %v708, 0.0
      %v764 = vmax.f32 %v710, 0.0
      %v765 = vmax.f32 %v713, 0.0
      %v766 = vmax.f32 %v715, 0.0
      %v767 = vmax.f32 %v718, 0.0
      %v768 = vmax.f32 %v720, 0.0
      %v769 = vmax.f32 %v723, 0.0
      %v770 = vmax.f32 %v725, 0.0
      %v771 = vmax.f32 %v728, 0.0
      %v772 = vmax.f32 %v730, 0.0
      %v773 = vmax.f32 %v733, 0.0
      %v774 = vmax.f32 %v735, 0.0
      %v775 = vmax.f32 %v738, 0.0
      %v776 = vmax.f32 %v740, 0.0
      %v777 = vmax.f32 %v743, 0.0
      %v778 = vmax.f32 %v745, 0.0
      %v779 = vpack.c.bf16 %v764, %v763
      %v780 = vpack.c.bf16 %v766, %v765
      %v781 = vpack.c.bf16 %v768, %v767
      %v782 = vpack.c.bf16 %v770, %v769
      %v783 = vpack.c.bf16 %v772, %v771
      %v784 = vpack.c.bf16 %v774, %v773
      %v785 = vpack.c.bf16 %v776, %v775
      %v786 = vpack.c.bf16 %v778, %v777
      %787 = vmatpush.bf16.msra.mxu0 %v556
      %788 = vmatpush.bf16.msra.mxu0 %v555
      %789 = vmatpush.bf16.msra.mxu0 %v554
      %790 = vmatpush.bf16.msra.mxu0 %v553
      %791 = vmatpush.bf16.msra.mxu0 %v552
      %792 = vmatpush.bf16.msra.mxu0 %v551
      %793 = vmatpush.bf16.msra.mxu0 %v550
      %794 = vmatpush.bf16.msra.mxu0 %v549
      %795 = vmatmul.bf16.gmra.mxu0 %v779
      %v796 = vpop.f32.mrf.mxu0
      %v797 = vadd.f32 %v515, %v796
      %v798 = vpop.f32.mrf.mxu0
      %v799 = vadd.f32 %v515, %v798
      %800 = vmatmul.bf16.gmra.mxu0 %v780
      %v801 = vpop.f32.mrf.mxu0
      %v802 = vadd.f32 %v515, %v801
      %v803 = vpop.f32.mrf.mxu0
      %v804 = vadd.f32 %v515, %v803
      %805 = vmatmul.bf16.gmra.mxu0 %v781
      %v806 = vpop.f32.mrf.mxu0
      %v807 = vadd.f32 %v515, %v806
      %v808 = vpop.f32.mrf.mxu0
      %v809 = vadd.f32 %v515, %v808
      %810 = vmatmul.bf16.gmra.mxu0 %v782
      %v811 = vpop.f32.mrf.mxu0
      %v812 = vadd.f32 %v515, %v811
      %v813 = vpop.f32.mrf.mxu0
      %v814 = vadd.f32 %v515, %v813
      %815 = vmatmul.bf16.gmra.mxu0 %v783
      %v816 = vpop.f32.mrf.mxu0
      %v817 = vadd.f32 %v515, %v816
      %v818 = vpop.f32.mrf.mxu0
      %v819 = vadd.f32 %v515, %v818
      %820 = vmatmul.bf16.gmra.mxu0 %v784
      %v821 = vpop.f32.mrf.mxu0
      %v822 = vadd.f32 %v515, %v821
      %v823 = vpop.f32.mrf.mxu0
      %v824 = vadd.f32 %v515, %v823
      %825 = vmatmul.bf16.gmra.mxu0 %v785
      %v826 = vpop.f32.mrf.mxu0
      %v827 = vadd.f32 %v515, %v826
      %v828 = vpop.f32.mrf.mxu0
      %v829 = vadd.f32 %v515, %v828
      %830 = vmatmul.bf16.gmra.mxu0 %v786
      %v831 = vpop.f32.mrf.mxu0
      %v832 = vadd.f32 %v515, %v831
      %v833 = vpop.f32.mrf.mxu0
      %v834 = vadd.f32 %v515, %v833
      %835 = vdwg.mxu0
      %836 = vst [vmem:[%s336 + $0x18] sm:$0xff] %v797
      %837 = vst [vmem:[%s336 + $0x40] sm:$0xff] %v799
      %838 = vst [vmem:[%s336 + $0x68] sm:$0xff] %v802
      %839 = vst [vmem:[%s336 + $0x90] sm:$0xff] %v804
      %840 = vst [vmem:[%s336 + $0xb8] sm:$0xff] %v807
      %841 = vst [vmem:[%s336 + $0xe0] sm:$0xff] %v809
      %842 = vst [vmem:[%s336 + $0x108] sm:$0xff] %v812
      %843 = vst [vmem:[%s336 + $0x130] sm:$0xff] %v814
      %844 = vst [vmem:[%s336 + $0x158] sm:$0xff] %v817
      %845 = vst [vmem:[%s336 + $0x180] sm:$0xff] %v819
      %846 = vst [vmem:[%s336 + $0x1a8] sm:$0xff] %v822
      %847 = vst [vmem:[%s336 + $0x1d0] sm:$0xff] %v824
      %848 = vst [vmem:[%s336 + $0x1f8] sm:$0xff] %v827
      %849 = vst [vmem:[%s336 + $0x220] sm:$0xff] %v829
      %850 = vst [vmem:[%s336 + $0x248] sm:$0xff] %v832
      %851 = vst [vmem:[%s336 + $0x270] sm:$0xff] %v834
      %v852 = vld [vmem:[%s5] sm:$0xf]
      %v853 = vld [vmem:[%s5 + $0x4] sm:$0xf]
      %v854 = vld [vmem:[%s5 + $0x8] sm:$0xf]
      %v855 = vld [vmem:[%s5 + $0xc] sm:$0xf]
      %v856 = vld [vmem:[%s5 + $0x10] sm:$0xf]
      %v857 = vld [vmem:[%s5 + $0x14] sm:$0xf]
      %v858 = vld [vmem:[%s5 + $0x18] sm:$0xf]
      %v859 = vld [vmem:[%s5 + $0x1c] sm:$0xf]
      %v860 = vld [vmem:[%s5 + $0x20] sm:$0xf]
      %v861 = vld [vmem:[%s5 + $0x24] sm:$0xf]
      %v862 = vld [vmem:[%s5 + $0x28] sm:$0xf]
      %v863 = vld [vmem:[%s5 + $0x2c] sm:$0xf]
      %v864 = vld [vmem:[%s5 + $0x30] sm:$0xf]
      %v865 = vld [vmem:[%s5 + $0x34] sm:$0xf]
      %v866 = vld [vmem:[%s5 + $0x38] sm:$0xf]
      %v867 = vld [vmem:[%s5 + $0x3c] sm:$0xf]
      %v868 = vld [vmem:[%s6] sm:$0x1]
      %v870 = vperm.slane %v868, 0
      %v888 = vunpack.c.l.b16 %v852
      %v889 = vunpack.c.l.b16 %v853
      %v890 = vunpack.c.l.b16 %v854
      %v891 = vunpack.c.l.b16 %v855
      %v892 = vunpack.c.l.b16 %v856
      %v893 = vunpack.c.l.b16 %v857
      %v894 = vunpack.c.l.b16 %v858
      %v895 = vunpack.c.l.b16 %v859
      %v896 = vunpack.c.l.b16 %v860
      %v897 = vunpack.c.l.b16 %v861
      %v898 = vunpack.c.l.b16 %v862
      %v899 = vunpack.c.l.b16 %v863
      %v900 = vunpack.c.l.b16 %v864
      %v901 = vunpack.c.l.b16 %v865
      %v902 = vunpack.c.l.b16 %v866
      %v903 = vunpack.c.l.b16 %v867
      %v904 = vpack.c.b16 %v889, %v888
      %v905 = vpack.c.b16 %v891, %v890
      %v906 = vpack.c.b16 %v893, %v892
      %v907 = vpack.c.b16 %v895, %v894
      %v908 = vpack.c.b16 %v897, %v896
      %v909 = vpack.c.b16 %v899, %v898
      %v910 = vpack.c.b16 %v901, %v900
      %v911 = vpack.c.b16 %v903, %v902
      %920 = vmatpush.bf16.msra.mxu0 %v911
      %921 = vmatpush.bf16.msra.mxu0 %v910
      %922 = vmatpush.bf16.msra.mxu0 %v909
      %923 = vmatpush.bf16.msra.mxu0 %v908
      %924 = vmatpush.bf16.msra.mxu0 %v907
      %925 = vmatpush.bf16.msra.mxu0 %v906
      %926 = vmatpush.bf16.msra.mxu0 %v905
      %927 = vmatpush.bf16.msra.mxu0 %v904
      %928 = vmatmul.bf16.gmra.mxu0 %v779
      %v929 = vpop.f32.mrf.mxu0
      %v930 = vadd.f32 %v870, %v929
      %v931 = vpop.f32.mrf.mxu0
      %v932 = vadd.f32 %v870, %v931
      %933 = vmatmul.bf16.gmra.mxu0 %v780
      %v934 = vpop.f32.mrf.mxu0
      %v935 = vadd.f32 %v870, %v934
      %v936 = vpop.f32.mrf.mxu0
      %v937 = vadd.f32 %v870, %v936
      %938 = vmatmul.bf16.gmra.mxu0 %v781
      %v939 = vpop.f32.mrf.mxu0
      %v940 = vadd.f32 %v870, %v939
      %v941 = vpop.f32.mrf.mxu0
      %v942 = vadd.f32 %v870, %v941
      %943 = vmatmul.bf16.gmra.mxu0 %v782
      %v944 = vpop.f32.mrf.mxu0
      %v945 = vadd.f32 %v870, %v944
      %v946 = vpop.f32.mrf.mxu0
      %v947 = vadd.f32 %v870, %v946
      %948 = vmatmul.bf16.gmra.mxu0 %v783
      %v949 = vpop.f32.mrf.mxu0
      %v950 = vadd.f32 %v870, %v949
      %v951 = vpop.f32.mrf.mxu0
      %v952 = vadd.f32 %v870, %v951
      %953 = vmatmul.bf16.gmra.mxu0 %v784
      %v954 = vpop.f32.mrf.mxu0
      %v955 = vadd.f32 %v870, %v954
      %v956 = vpop.f32.mrf.mxu0
      %v957 = vadd.f32 %v870, %v956
      %958 = vmatmul.bf16.gmra.mxu0 %v785
      %v959 = vpop.f32.mrf.mxu0
      %v960 = vadd.f32 %v870, %v959
      %v961 = vpop.f32.mrf.mxu0
      %v962 = vadd.f32 %v870, %v961
      %963 = vmatmul.bf16.gmra.mxu0 %v786
      %v964 = vpop.f32.mrf.mxu0
      %v965 = vadd.f32 %v870, %v964
      %v966 = vpop.f32.mrf.mxu0
      %v967 = vadd.f32 %v870, %v966
      %968 = vdwg.mxu0
      %969 = vst [vmem:[%s336 + $0x20] sm:$0xff] %v930
      %970 = vst [vmem:[%s336 + $0x48] sm:$0xff] %v932
      %971 = vst [vmem:[%s336 + $0x70] sm:$0xff] %v935
      %972 = vst [vmem:[%s336 + $0x98] sm:$0xff] %v937
      %973 = vst [vmem:[%s336 + $0xc0] sm:$0xff] %v940
      %974 = vst [vmem:[%s336 + $0xe8] sm:$0xff] %v942
      %975 = vst [vmem:[%s336 + $0x110] sm:$0xff] %v945
      %976 = vst [vmem:[%s336 + $0x138] sm:$0xff] %v947
      %977 = vst [vmem:[%s336 + $0x160] sm:$0xff] %v950
      %978 = vst [vmem:[%s336 + $0x188] sm:$0xff] %v952
      %979 = vst [vmem:[%s336 + $0x1b0] sm:$0xff] %v955
      %980 = vst [vmem:[%s336 + $0x1d8] sm:$0xff] %v957
      %981 = vst [vmem:[%s336 + $0x200] sm:$0xff] %v960
      %982 = vst [vmem:[%s336 + $0x228] sm:$0xff] %v962
      %983 = vst [vmem:[%s336 + $0x250] sm:$0xff] %v965
      %984 = vst [vmem:[%s336 + $0x278] sm:$0xff] %v967
      %s985 = smul.u32 16, %s20
      %p986 = scmp.lt.s32.totalorder %s985, 31
      %s987 = scalar_select %p986, %s985, 31
      %s988 = smul.addr %s987, 5
      %s989 = smul.addr %s988, 8
      %s990 = scalar_lea.vmem %s9, %s989
      // Predicated region
      $region57: #{mlp_forward.1} parent=55 // pred_check
        %p991 = pneg %p232
      $region58: #{mlp_forward.1} parent=55 // pred_check_branch
        %993 = sbr.rel (%p991) target = $region60
      $region59: #{mlp_forward.1} parent=55 // pred_region
        %s994 = smul.u32 16, %s20
      $region60: #{mlp_forward.1} parent=55 // pred_fallthru
        _
    $region56: #{mlp_forward.1} parent=5 // pred_fallthru
      _
    %p995 = scmp.le.s32.totalorder 2, %s15
    // Predicated region
    $region61: #{mlp_forward.1} parent=5 // pred_check
      %p996 = pneg %p995
    $region62: #{mlp_forward.1} parent=5 // pred_check_branch
      %998 = sbr.rel (%p996) target = $region64
    $region63: #{mlp_forward.1} parent=5 // pred_region
      %s999 = ssub.s32 %s15, 2
      // Predicated region
      $region65: #{mlp_forward.1} parent=63 // pred_check
        %p1000 = pneg %p238
      $region66: #{mlp_forward.1} parent=63 // pred_check_branch
        %1002 = sbr.rel (%p1000) target = $region68
      $region67: #{mlp_forward.1} parent=63 // pred_region
        %s1003 = smul.u32 16, %s21
        %p1004 = scmp.lt.s32.totalorder %s1003, 31
        %s1005 = scalar_select %p1004, %s1003, 31
        %s1006 = smul.addr %s1005, 5
        %s1007 = smul.addr %s1006, 8
        %s1008 = scalar_lea.vmem %s9, %s1007
      $region68: #{mlp_forward.1} parent=63 // pred_fallthru
        _
    $region64: #{mlp_forward.1} parent=5 // pred_fallthru
      _
  $region6: #{mlp_forward.1} parent=0 // loop_footer
    %s19 = sadd.s32 1, %s15
  $region7: #{mlp_forward.1} parent=0 // loop_footer_branch
    %14 = sbr.rel target = $region3
  $region8: #{mlp_forward.1} parent=0 // loop_exit
    _

</llo_original>
